<compile_context>
chip_gen: v7x
topology: tpu7x:2x2x1
jax: 0.10.0
libtpu: 0.0.40
codegen_flags: <defaults>
</compile_context>

<pallas_src>
import functools

import jax
import jax.numpy as jnp
from jax import lax
from jax.experimental import pallas as pl
from jax.experimental.pallas import tpu as pltpu

K = 5     # conv kernel size (all three convs)
PAD = 2   # 'same' padding


# ----------------------------------------------------------------------------
# pltpu.roll direction guard (matches jnp.roll in current JAX; probed once so
# the conv-tap shifts stay correct even if the convention ever changes).
# ----------------------------------------------------------------------------
def _roll_probe_kernel(x_ref, o_ref):
    o_ref[...] = pltpu.roll(x_ref[...], 1, 1)


@functools.cache
def _roll_sign():
    """Returns s such that pltpu.roll(h, (s*d) % N, 1)[:, n] == h[:, (n+d) % N]."""
    x = jnp.arange(8 * 128, dtype=jnp.float32).reshape(8, 128)
    y = pl.pallas_call(
        _roll_probe_kernel,
        out_shape=jax.ShapeDtypeStruct((8, 128), jnp.float32),
    )(x)
    return -1 if bool(jnp.array_equal(y, jnp.roll(x, 1, axis=1))) else 1


# ----------------------------------------------------------------------------
# Kernel factory
# ----------------------------------------------------------------------------
def _make_kernel(tb, L, roll_sign):
    """Per-grid-step kernel over one tile of `tb` samples, flattened to N=tb*L lanes."""
    N = tb * L

    def neighbor(h, d):
        """h[:, n + d] with flat wrap-around (wrapped lanes are masked by the
        caller or land on don't-care positions)."""
        shift = (roll_sign * d) % N
        return h if shift == 0 else pltpu.roll(h, shift, 1)

    def conv_taps(h, col, dilation):
        """K shifted+masked views of h for a kernel-5 / padding-2 conv whose
        valid data sits at within-sample positions that are multiples of
        `dilation` (un-compacted max-pool outputs)."""
        views = []
        for k in range(K):
            d = (k - PAD) * dilation
            if d == 0:
                views.append(h)
            else:
                v = neighbor(h, d)
                mask = jnp.logical_and(col + d >= 0, col + d < L)
                views.append(jnp.where(mask, v, jnp.zeros_like(v)))
        return views

    def kernel(x_ref, w1_ref, b1_ref, w2_ref, b2_ref, w3_ref, b3_ref,
               wfc_ref, bfc_ref, o_ref):
        col = lax.broadcasted_iota(jnp.int32, (1, N), 1) % L   # within-sample pos

        # ---- conv1 (1 -> 16) + ReLU: VPU broadcast MACs (dilation 1) ---------
        x = x_ref[0]                                           # (1, N)
        w1 = w1_ref[...]                                       # (16, K)
        acc = jnp.zeros((w1.shape[0], N), jnp.float32)
        for k, v in enumerate(conv_taps(x, col, 1)):
            acc = acc + w1[:, k:k + 1] * v                     # (16,1) * (1,N)
        h = jnp.maximum(acc + b1_ref[...], 0.0)                # (16, N)

        # ---- maxpool1: roll + max, no lane compaction (dilation 1 -> 2) ------
        h = jnp.maximum(h, neighbor(h, 1))

        # ---- conv2 (16 -> 32) + ReLU: single im2col MXU matmul (dilation 2) --
        w2 = w2_ref[...]                                       # (32, K*16)
        p2 = jnp.concatenate(conv_taps(h, col, 2), axis=0)     # (K*16, N)
        h = jnp.dot(w2, p2.astype(w2.dtype),
                    preferred_element_type=jnp.float32) + b2_ref[...]
        h = jnp.maximum(h, 0.0)                                # (32, N)

        # ---- maxpool2 (dilation 2 -> 4) ---------------------------------------
        h = jnp.maximum(h, neighbor(h, 2))

        # ---- conv3 (32 -> 64) + ReLU: single im2col MXU matmul (dilation 4) --
        w3 = w3_ref[...]                                       # (64, K*32)
        p3 = jnp.concatenate(conv_taps(h, col, 4), axis=0)     # (K*32, N)
        h = jnp.dot(w3, p3.astype(w3.dtype),
                    preferred_element_type=jnp.float32) + b3_ref[...]
        h = jnp.maximum(h, 0.0)                                # (64, N)

        # ---- head: AdaptiveAvgPool1d(1) + Linear(64 -> 1), fused (VPU/XLU) ---
        # out[b] = bfc + (4/L) * sum_{c, q % 4 == 0} wfc[c] * h[c, b*L + q]
        chan = jnp.sum(h * wfc_ref[...], axis=0, keepdims=True)    # (1, N)
        chan = jnp.where(col % 4 == 0, chan, 0.0)                  # valid stride-4 pos
        per_sample = jnp.sum(chan.reshape(1, tb, L), axis=-1)      # (1, tb)
        o_ref[0] = per_sample * (4.0 / L) + bfc_ref[...]           # lane-dense row

    return kernel


# ----------------------------------------------------------------------------
# Wrapper
# ----------------------------------------------------------------------------
def _choose_tb(B, L, max_elems=8192):
    """Samples per grid step: large enough to amortize per-step overhead and to
    give lane-dense output rows, small enough that the flattened (C, tb*L)
    activations stay comfortably inside scoped VMEM on v5e/v6e/v7x."""
    tb = min(128, B)
    tb = min(tb, max(1, max_elems // L))
    if tb >= 8:
        tb -= tb % 8
    return max(tb, 1)


def simple_cnn_forward(x, params, *, tb=None, matmul_dtype=jnp.float32):
    """x: (B, input_length) float32 -> (B, 1) float32.

    `matmul_dtype=jnp.bfloat16` feeds bf16 operands to the conv2/conv3 MXU
    matmuls (recommended on v6e/v7x when the accuracy budget allows);
    accumulation and all elementwise work stay float32 (v5e-friendly).
    """
    B, L = x.shape
    if L % 4 != 0:
        raise ValueError("input_length must be divisible by 4 (two MaxPool1d(2)).")
    W1, c1, W2, c2, W3, c3, Wfc, bfc = params

    # Kernel-layout parameters (all 2-D):
    #   conv1: (Cout, K); conv2/3: (Cout, K*Cin) matching the im2col row order
    #   (tap k major, cin minor); biases (Cout, 1); fc (64, 1) and (1, 1).
    w1 = W1[:, 0, :].astype(jnp.float32)
    w2 = jnp.transpose(W2, (0, 2, 1)).reshape(W2.shape[0], -1).astype(matmul_dtype)
    w3 = jnp.transpose(W3, (0, 2, 1)).reshape(W3.shape[0], -1).astype(matmul_dtype)
    b1, b2, b3 = c1[:, None], c2[:, None], c3[:, None]
    wfc = Wfc.reshape(-1)[:, None].astype(jnp.float32)         # (64, 1)
    bfc2 = bfc.reshape(1, 1).astype(jnp.float32)               # (1, 1)

    if tb is None:
        tb = _choose_tb(B, L)
    num_tiles = -(-B // tb)
    B_pad = num_tiles * tb
    x = x.astype(jnp.float32)
    if B_pad != B:
        x = jnp.concatenate([x, jnp.zeros((B_pad - B, L), jnp.float32)], axis=0)
    # Flatten each tile of tb samples onto the lane axis: (num_tiles, 1, tb*L).
    x_tiles = x.reshape(num_tiles, 1, tb * L)

    def _const(a):
        nd = a.ndim
        return pl.BlockSpec(a.shape, lambda i, _n=nd: (0,) * _n)

    out = pl.pallas_call(
        _make_kernel(tb, L, _roll_sign()),
        out_shape=jax.ShapeDtypeStruct((num_tiles, 1, tb), jnp.float32),
        grid=(num_tiles,),
        in_specs=[pl.BlockSpec((1, 1, tb * L), lambda i: (i, 0, 0)),
                  _const(w1), _const(b1), _const(w2), _const(b2),
                  _const(w3), _const(b3), _const(wfc), _const(bfc2)],
        out_specs=pl.BlockSpec((1, 1, tb), lambda i: (i, 0, 0)),
        compiler_params=pltpu.CompilerParams(
            dimension_semantics=("parallel",),      # megacore-shardable on v7x
            vmem_limit_bytes=32 * 1024 * 1024,
        ),
    )(x_tiles, w1, b1, w2, b2, w3, b3, wfc, bfc2)

    return out.reshape(B_pad, 1)[:B]


# ----------------------------------------------------------------------------
# Deterministic parameters (PyTorch-like fan-in uniform) with eval-mode
# BatchNorm folded into the conv weights/biases.  Canonical layouts:
# conv (Cout, Cin, K), bias (Cout,), fc (1, 64) / (1,).
# ----------------------------------------------------------------------------
def init_params(key, eps=1e-5):
    ks = jax.random.split(key, 20)

    def uni(k, shape, fan_in):
        bound = 1.0 / (fan_in ** 0.5)
        return jax.random.uniform(k, shape, jnp.float32, -bound, bound)

    W1, c1 = uni(ks[0], (16, 1, K), 1 * K),   uni(ks[1], (16,), 1 * K)
    W2, c2 = uni(ks[2], (32, 16, K), 16 * K), uni(ks[3], (32,), 16 * K)
    W3, c3 = uni(ks[4], (64, 32, K), 32 * K), uni(ks[5], (64,), 32 * K)
    Wfc, bfc = uni(ks[6], (1, 64), 64),       uni(ks[7], (1,), 64)

    def bn(kg, kb, km, kv, c):
        gamma = 1.0 + 0.1 * jax.random.normal(kg, (c,), jnp.float32)
        beta = 0.1 * jax.random.normal(kb, (c,), jnp.float32)
        mean = 0.1 * jax.random.normal(km, (c,), jnp.float32)
        var = 1.0 + 0.1 * jnp.abs(jax.random.normal(kv, (c,), jnp.float32))
        return gamma, beta, mean, var

    def fold(W, b, stats):
        gamma, beta, mean, var = stats
        s = gamma / jnp.sqrt(var + eps)
        return W * s[:, None, None], b * s + beta - mean * s

    W1, c1 = fold(W1, c1, bn(ks[8], ks[9], ks[10], ks[11], 16))
    W2, c2 = fold(W2, c2, bn(ks[12], ks[13], ks[14], ks[15], 32))
    W3, c3 = fold(W3, c3, bn(ks[16], ks[17], ks[18], ks[19], 64))
    return (W1, c1, W2, c2, W3, c3, Wfc, bfc)


# ----------------------------------------------------------------------------
# Plain-XLA reference (independent formulation) for the correctness check.
# ----------------------------------------------------------------------------
def reference_forward(x, params):
    W1, c1, W2, c2, W3, c3, Wfc, bfc = params

    def conv(h, W, b):
        out = lax.conv_general_dilated(
            h, W, window_strides=(1,), padding=((PAD, PAD),),
            dimension_numbers=("NCH", "OIH", "NCH"),
            precision=lax.Precision.HIGHEST)
        return out + b[None, :, None]

    def pool(h):
        bsz, c, l = h.shape
        return jnp.max(h.reshape(bsz, c, l // 2, 2), axis=-1)

    h = x[:, None, :]
    h = pool(jnp.maximum(conv(h, W1, c1), 0.0))
    h = pool(jnp.maximum(conv(h, W2, c2), 0.0))
    h = jnp.maximum(conv(h, W3, c3), 0.0)
    feat = jnp.mean(h, axis=-1)                                        # (B, 64)
    return jnp.dot(feat, Wfc.T, precision=lax.Precision.HIGHEST) + bfc[None, :]


if __name__ == "__main__":
    key = jax.random.PRNGKey(0)
    kx, kp = jax.random.split(key)

    B, input_length = 20, 64            # small demo; exercises multi-tile grid + padding
    x = jax.random.normal(kx, (B, input_length), jnp.float32)
    params = init_params(kp)

    y = simple_cnn_forward(x, params)
    jax.block_until_ready(y)

    y_ref = reference_forward(x, params)
    assert y.shape == (B, 1), y.shape
    assert jnp.allclose(y, y_ref, atol=1e-3, rtol=1e-3), (y, y_ref)

    print("KERNEL_OK")
</pallas_src>

<mosaic_0001>
module attributes {stable_mosaic.version = 11 : i64} {
  func.func @_roll_probe_kernel(%arg0: memref<8x128xf32, #tpu.memory_space<vmem>>, %arg1: memref<8x128xf32, #tpu.memory_space<vmem>>) attributes {dimension_semantics = [], scalar_prefetch = 0 : i64, scratch_operands = 0 : i64, tpu.core_type = #tpu.core_type<tc>} {
    %c0 = arith.constant 0 : index
    %c0_0 = arith.constant 0 : index
    %0 = vector.load %arg0[%c0, %c0_0] : memref<8x128xf32, #tpu.memory_space<vmem>>, vector<8x128xf32>
    %c1_i32 = arith.constant 1 : i32
    %1 = tpu.dynamic_rotate %0 by %c1_i32 dim 1 : vector<8x128xf32>, i32 -> vector<8x128xf32>
    %c0_1 = arith.constant 0 : index
    %c0_2 = arith.constant 0 : index
    %2 = vector.load %arg1[%c0_1, %c0_2] : memref<8x128xf32, #tpu.memory_space<vmem>>, vector<8x128xf32>
    tpu.vector_store %arg1[%c0_1, %c0_2], %1 {strides = array<i32>} : memref<8x128xf32, #tpu.memory_space<vmem>>, vector<8x128xf32>,
    return
  }
}

</mosaic_0001>

<llo_original>
// kernel: tpu_custom_call.1
$region0: #{tpu_custom_call.1}
  #allocation0 [shape = 'u32[]', space=smem, size = 0x4, offset = 0x4, fixed_abs, tag = 'smem constant byte address 0x4 - core index']
  #allocation1 [shape = 'u32[144,128]{1,0:T(1,128)}', space=vmem, size = 0x12000, scoped, tag = 'internal scratch']
  %s0 = inlined_call_operand.hbm [shape: f32[8,128], index: 0, kind: input, shape index: {}]
  %s1 = inlined_call_operand.hbm [shape: f32[8,128], index: 1, kind: output, shape index: {}]
  %s2 = sld [smem:[#allocation0]]
  $region18: #{tpu_custom_call.1} parent=0
    _
  %s4 = ssub.s32 1, %s2
  %s5 = scalar_select 0, %s4, %s2
  $region1: #{tpu_custom_call.1} parent=0
    #allocation2 [shape = 'u8[4096]{0}', space=vmem, size = 0x1000, scoped, tag = 'input window, operand 0, single buffered']
    #allocation3 [shape = 's32[1]{0}', space=sflag, size = 0x4, scoped, tag = 'scoped memory for tpu_custom_call.1']
    #allocation4 [shape = 's32[1]{0}', space=sflag, size = 0x4, scoped, tag = 'scoped memory for tpu_custom_call.1']
    #allocation5 [shape = 'u8[4096]{0}', space=vmem, size = 0x1000, scoped, tag = 'output window, operand 0, single buffered']
    %6 = vsyncpa [#allocation3], 0
    %7 = vsyncpa [#allocation4], 0
    // Predicated region
    $region2: #{tpu_custom_call.1} parent=1 // pred_check
      _
    $region3: #{tpu_custom_call.1} parent=1 // pred_check_branch
      %9 = sbr.rel (0) target = $region5
    $region4: #{tpu_custom_call.1} parent=1 // pred_region
      %s11 = ssub.s32 128, 128
      %12 = vsyncadd [#allocation3], %s11
      %s14 = sshll.u32 [#allocation2], 4
      %s15 = int_to_ptr.vmem [resolvable:$true] %s14
      %17 = dma.hbm_to_vmem [thread:$0]  %s0, 128, %s15, [#allocation3]
    $region5: #{tpu_custom_call.1} parent=1 // pred_fallthru
      _
    // Predicated region
    $region6: #{tpu_custom_call.1} parent=1 // pred_check
      _
    $region7: #{tpu_custom_call.1} parent=1 // pred_check_branch
      %19 = sbr.rel (0) target = $region9
    $region8: #{tpu_custom_call.1} parent=1 // pred_region
      %20 = dma.done [#allocation3], 128
    $region9: #{tpu_custom_call.1} parent=1 // pred_fallthru
      _
    %v21 = vld [vmem:[#allocation2] sm:$0xff]
    %22 = vrot.lane.b32.xlu0 %v21, 1
    %v23 = vpop.permute.xlu0 %22
    %24 = vst [vmem:[#allocation5] sm:$0xff] %v23
    // Predicated region
    $region10: #{tpu_custom_call.1} parent=1 // pred_check
      _
    $region11: #{tpu_custom_call.1} parent=1 // pred_check_branch
      %26 = sbr.rel (0) target = $region13
    $region12: #{tpu_custom_call.1} parent=1 // pred_region
      %s28 = ssub.s32 128, 128
      %29 = vsyncadd [#allocation4], %s28
      %s31 = sshll.u32 [#allocation5], 4
      %s32 = int_to_ptr.vmem [resolvable:$true] %s31
      %34 = dma.vmem_to_hbm [thread:$0]  %s32, 128, %s1, [#allocation4]
    $region13: #{tpu_custom_call.1} parent=1 // pred_fallthru
      _
    // Predicated region
    $region14: #{tpu_custom_call.1} parent=1 // pred_check
      _
    $region15: #{tpu_custom_call.1} parent=1 // pred_check_branch
      %36 = sbr.rel (0) target = $region17
    $region16: #{tpu_custom_call.1} parent=1 // pred_region
      %37 = dma.done [#allocation4], 128
    $region17: #{tpu_custom_call.1} parent=1 // pred_fallthru
      _
    %38 = vsyncpa [#allocation3], 1
    %39 = vsyncpa [#allocation4], 1

</llo_original>
